<compile_context>
chip_gen: v7x
topology: tpu7x:2x2x1
jax: 0.10.0
libtpu: 0.0.40
codegen_flags: <defaults>
</compile_context>

<pallas_src>
import math

import jax
import jax.numpy as jnp
from jax import lax
from jax.experimental import pallas as pl
from jax.experimental.pallas import tpu as pltpu


def sinusoid_positional_encoding(channels, *shape, dtype=jnp.float32):
    """JAX replica of the PyTorch sinusoid table builder (learned=False path)."""
    dims = len(shape)
    assert channels % dims == 0
    c = channels // dims
    wavelength = jnp.exp(-math.log(10000.0) * jnp.arange(0, c, 2, dtype=dtype) / c)
    encoding = jnp.zeros((*shape, channels), dtype=dtype)
    for i, s in enumerate(shape):
        t = jnp.arange(0, s, dtype=dtype)[:, None] * wavelength      # (s, c//2)
        t_shape = [1] * dims + [c // 2]
        t_shape[i] = s
        t = t.reshape(t_shape)
        sin = jnp.broadcast_to(jnp.sin(t), (*shape, c // 2))
        cos = jnp.broadcast_to(jnp.cos(t), (*shape, c // 2))
        encoding = encoding.at[..., i * c:(i + 1) * c:2].set(sin)
        encoding = encoding.at[..., i * c + 1:(i + 1) * c:2].set(cos)
    return encoding


def _round_up(x, m):
    return ((x + m - 1) // m) * m


def _default_max_tm():
    """256 for the 256-wide MXUs of v6e/v7x; 128 for v5e's 128x128 MXU."""
    try:
        kind = jax.devices()[0].device_kind.lower()
        if "v5 lite" in kind or "v5e" in kind or "v5lite" in kind:
            return 128
    except Exception:
        pass
    return 256


def _choose_tm(m_pad, max_tm):
    """Largest multiple-of-8 divisor of m_pad that is <= max_tm, preferring a
    grid of >= 2 steps (so v7x can shard the steps across both TensorCores)."""
    limit = min(max_tm, m_pad)
    if m_pad >= 16:
        limit = min(limit, m_pad // 2)
    best = 8
    t = 16
    while t <= limit:
        if m_pad % t == 0:
            best = t
        t += 8
    return best


def _make_kernel(*, table_rows, s_strip, channels):
    """One fused (bf16) one-hot @ table matmul per row tile, strip-tiled over
    the table's row dimension so the live one-hot stays a bounded vreg slab."""

    def kernel(flat_ref, table_ref, pe_ref):
        flat = flat_ref[...]                              # (tm, 1) int32, pre-clamped
        tm = flat.shape[0]
        acc = jnp.zeros((tm, channels), jnp.float32)
        for base in range(0, table_rows, s_strip):        # static strip loop
            length = min(s_strip, table_rows - base)
            cols = base + lax.broadcasted_iota(jnp.int32, (tm, length), 1)
            onehot = (flat == cols).astype(table_ref.dtype)   # exact 0/1 in bf16
            acc = acc + jnp.dot(onehot, table_ref[base:base + length, :],
                                preferred_element_type=jnp.float32)
        pe_ref[...] = acc.astype(pe_ref.dtype)

    return kernel


def positional_encoding_forward(i, pe_table, *, table_dtype=jnp.bfloat16,
                                out_dtype=jnp.float32, max_tm=None,
                                table_strip=512):
    """Pallas implementation of PositionalEncoding.forward.

    i:        (n, b, d) integer indices
    pe_table: (*data_shape, channels) float table (learned param or sinusoid buffer)
    Returns (pe: (n, b, channels) out_dtype, cm: (n, n, b) bool all-False).
    Note: the table is gathered in `table_dtype` (bf16 by default, bf16-native
    MXU); pass table_dtype=jnp.float32 if bit-exact f32 gather is required.
    """
    n, b, d = i.shape
    data_shape = tuple(int(s) for s in pe_table.shape[:-1])
    channels = int(pe_table.shape[-1])
    assert len(data_shape) == d, "index dims must match table dims"

    # Row-major strides of the row-flattened table.
    strides = []
    s = 1
    for dim in reversed(data_shape):
        strides.append(s)
        s *= dim
    strides = tuple(reversed(strides))
    table_rows = s

    table = pe_table.reshape(table_rows, channels).astype(table_dtype)

    # Flatten + clamp the indices in the wrapper (negligible XLA work); clamp
    # matches jnp gather semantics (PyTorch would raise on OOB).
    M = n * b
    idx = i.reshape(M, d).astype(jnp.int32)
    flat = jnp.zeros((M,), jnp.int32)
    for j in range(d):
        flat = flat + jnp.clip(idx[:, j], 0, data_shape[j] - 1) * strides[j]
    flat = flat[:, None]                                          # (M, 1)

    if max_tm is None:
        max_tm = _default_max_tm()

    M_pad = _round_up(M, 8)
    tm = _choose_tm(M_pad, max_tm)
    if M_pad != M:
        flat = jnp.pad(flat, ((0, M_pad - M), (0, 0)))            # pad rows gather row 0

    s_strip = min(table_rows, table_strip)
    kernel = _make_kernel(table_rows=table_rows, s_strip=s_strip, channels=channels)

    # Raise the scoped-VMEM limit only if the (double-buffered) resident table
    # plus working set would not fit the default scoped limit.
    tbl_bytes = table_rows * channels * jnp.dtype(table_dtype).itemsize
    est = (2 * tbl_bytes                                   # double-buffered table
           + 2 * tm * 4                                    # flat-index blocks
           + 2 * tm * channels * jnp.dtype(out_dtype).itemsize   # output blocks
           + tm * s_strip * 2                              # live one-hot strip
           + (1 << 20))                                    # headroom
    cp_kwargs = dict(dimension_semantics=("parallel",))
    if est > (30 << 20):
        cp_kwargs["vmem_limit_bytes"] = min(int(est * 1.25), 100 * 1024 * 1024)

    pe_flat = pl.pallas_call(
        kernel,
        grid=(M_pad // tm,),
        in_specs=[
            pl.BlockSpec((tm, 1), lambda r: (r, 0)),                 # flat row index
            pl.BlockSpec((table_rows, channels), lambda r: (0, 0)),  # resident table
        ],
        out_specs=pl.BlockSpec((tm, channels), lambda r: (r, 0)),
        out_shape=jax.ShapeDtypeStruct((M_pad, channels), out_dtype),
        compiler_params=pltpu.CompilerParams(**cp_kwargs),
    )(flat, table)

    if M_pad != M:
        pe = pe_flat[:M].reshape(n, b, channels)
    else:
        pe = pe_flat.reshape(n, b, channels)                       # contiguous reshape only
    # cm is identically False in this module; no kernel work / HBM writeback needed.
    cm = jnp.zeros((n, n, b), dtype=bool)
    return pe, cm


def reference(i, pe_table):
    """Pure-JAX replica of the PyTorch forward (for validation)."""
    n, b, d = i.shape
    pe = pe_table[tuple(i[..., j] for j in range(d))]              # (n, b, C)
    cm = jnp.zeros((n, n, b), dtype=bool)
    return pe, cm


if __name__ == "__main__":
    key = jax.random.PRNGKey(0)

    # Module config (channels % d == 0 as the sinusoid builder requires).
    channels = 128
    data_shape = (16, 16)
    d = len(data_shape)
    n, b = 16, 2

    # Non-learned (sinusoid) table so the test is non-degenerate
    # (learned=True initializes the table to zeros).
    pe_table = sinusoid_positional_encoding(channels, *data_shape)

    # Deterministic indices: coord j in [0, data_shape[j]).
    ikeys = jax.random.split(key, d)
    i = jnp.stack(
        [jax.random.randint(ikeys[j], (n, b), 0, data_shape[j], dtype=jnp.int32)
         for j in range(d)], axis=-1)                              # (n, b, d)

    pe, cm = positional_encoding_forward(i, pe_table)
    jax.block_until_ready(pe)
    jax.block_until_ready(cm)

    # The kernel gathers the bf16-rounded table (exact row select in bf16), so
    # validate tightly against a gather of the rounded table ...
    pe_ref, cm_ref = reference(i, pe_table.astype(jnp.bfloat16).astype(jnp.float32))
    # ... and loosely against the full-precision table.
    pe_ref32, _ = reference(i, pe_table)

    assert pe.shape == (n, b, channels) and cm.shape == (n, n, b)
    assert pe.dtype == jnp.float32
    assert jnp.allclose(pe, pe_ref, atol=1e-6, rtol=0), "positional encoding mismatch"
    assert jnp.allclose(pe, pe_ref32, atol=1e-2, rtol=0), "positional encoding drifted"
    assert jnp.array_equal(cm, cm_ref), "causal mask mismatch"

    print("KERNEL_OK")
</pallas_src>

<mosaic_0001>
module attributes {stable_mosaic.version = 11 : i64} {
  func.func @kernel(%arg0: i32, %arg1: memref<16x1xi32, #tpu.memory_space<vmem>>, %arg2: memref<256x128xbf16, #tpu.memory_space<vmem>>, %arg3: memref<16x128xf32, #tpu.memory_space<vmem>>) attributes {dimension_semantics = [#tpu.dimension_semantics<parallel>], iteration_bounds = array<i64: 2>, scalar_prefetch = 0 : i64, scratch_operands = 0 : i64, tpu.core_type = #tpu.core_type<tc>, window_params = [{transform_indices = @transform_0, window_bounds = array<i64: 16, 1>}, {pipeline_mode = #tpu.pipeline_mode<synchronous>, transform_indices = @transform_1, window_bounds = array<i64: 256, 128>}, {transform_indices = @transform_2, window_bounds = array<i64: 16, 128>}]} {
    %c0 = arith.constant 0 : index
    %c0_0 = arith.constant 0 : index
    %0 = vector.load %arg1[%c0, %c0_0] : memref<16x1xi32, #tpu.memory_space<vmem>>, vector<16x1xi32>
    %cst = arith.constant 0.000000e+00 : f32
    %1 = vector.broadcast %cst : f32 to vector<16x128xf32>
    %2 = tpu.iota {dimensions = array<i32: 1>} : vector<16x256xi32>
    %c0_i32 = arith.constant 0 : i32
    %3 = vector.broadcast %c0_i32 : i32 to vector<16x256xi32>
    %4 = arith.addi %3, %2 : vector<16x256xi32>
    %5 = vector.broadcast %0 : vector<16x1xi32> to vector<16x256xi32>
    %6 = arith.cmpi eq, %5, %4 : vector<16x256xi32>
    %7 = arith.extui %6 : vector<16x256xi1> to vector<16x256xi32>
    %8 = arith.sitofp %7 : vector<16x256xi32> to vector<16x256xf32>
    %9 = arith.truncf %8 : vector<16x256xf32> to vector<16x256xbf16>
    %c0_1 = arith.constant 0 : index
    %c0_2 = arith.constant 0 : index
    %10 = vector.load %arg2[%c0_1, %c0_2] : memref<256x128xbf16, #tpu.memory_space<vmem>>, vector<256x128xbf16>
    %cst_3 = arith.constant dense<0.000000e+00> : vector<16x128xf32>
    %11 = tpu.matmul %9, %10, %cst_3 {dimension_numbers = #tpu.dot_dimension_numbers<[1], [0], [0], [1], [0, 0, 1, 1], [], []>} : vector<16x256xbf16>, vector<256x128xbf16>, vector<16x128xf32> -> vector<16x128xf32>
    %12 = arith.addf %1, %11 : vector<16x128xf32>
    %c0_4 = arith.constant 0 : index
    %c0_5 = arith.constant 0 : index
    %13 = vector.load %arg3[%c0_4, %c0_5] : memref<16x128xf32, #tpu.memory_space<vmem>>, vector<16x128xf32>
    tpu.vector_store %arg3[%c0_4, %c0_5], %12 {strides = array<i32>} : memref<16x128xf32, #tpu.memory_space<vmem>>, vector<16x128xf32>,
    return
  }
  func.func @transform_0(%arg0: i32) -> (i32, i32) {
    %c0_i32 = arith.constant 0 : i32
    %c0_i32_0 = arith.constant 0 : i32
    return %arg0, %c0_i32 : i32, i32
  }
  func.func @transform_1(%arg0: i32) -> (i32, i32) {
    %c0_i32 = arith.constant 0 : i32
    %c0_i32_0 = arith.constant 0 : i32
    %c0_i32_1 = arith.constant 0 : i32
    return %c0_i32, %c0_i32_0 : i32, i32
  }
  func.func @transform_2(%arg0: i32) -> (i32, i32) {
    %c0_i32 = arith.constant 0 : i32
    %c0_i32_0 = arith.constant 0 : i32
    return %arg0, %c0_i32 : i32, i32
  }
}

</mosaic_0001>

<llo_original>
// kernel: tpu_custom_call.1
$region0: #{tpu_custom_call.1}
  #allocation0 [shape = 'u32[]', space=smem, size = 0x4, offset = 0x4, fixed_abs, tag = 'smem constant byte address 0x4 - core index']
  #allocation1 [shape = 'u32[144,128]{1,0:T(1,128)}', space=vmem, size = 0x12000, scoped, tag = 'internal scratch']
  %s0 = inlined_call_operand.vmem [shape: s32[32,1], index: 0, kind: input, shape index: {}]
  %s1 = inlined_call_operand.hbm [shape: bf16[256,128], index: 1, kind: input, shape index: {}]
  %s2 = inlined_call_operand.hbm [shape: f32[32,128], index: 2, kind: output, shape index: {}]
  %s3 = sld [smem:[#allocation0]]
  $region45: #{tpu_custom_call.1} parent=0
    _
  %s5 = ssub.s32 1, %s3
  %s6 = scalar_select 0, %s5, %s3
  $region1: #{tpu_custom_call.1} parent=0
    #allocation2 [shape = 'u8[65536]{0}', space=vmem, size = 0x10000, scoped, tag = 'input window, operand 1, single buffered']
    #allocation3 [shape = 's32[2]{0}', space=sflag, size = 0x8, scoped, tag = 'scoped memory for tpu_custom_call.1']
    #allocation4 [shape = 's32[2]{0}', space=sflag, size = 0x8, scoped, tag = 'scoped memory for tpu_custom_call.1']
    #allocation5 [shape = 'u8[16384]{0}', space=vmem, size = 0x4000, scoped, tag = 'output window, operand 0']
    %7 = vsyncpa [#allocation3], 0
    %8 = vsyncpa [#allocation4], 0
    %s9 = scalar_lea.sflag [#allocation4], 1
    %10 = vsyncpa %s9, 0
    loop: start=0, step=1, limit=4
    $region2: #{tpu_custom_call.1} parent=1 // loop_pre_header
      _
    $region3: #{tpu_custom_call.1} parent=1 // loop_header
      %s12 = sphi 0, %s16
      %p13 = scmp.ge.s32.totalorder %s12, 4
      %s22 = sphi 0, %s24
      %s25 = sphi 0, %s22
      %s26 = sphi 0, %s25
      %s42 = sphi 0, %s26
      %s46 = sphi 0, %s46
      %s48 = sphi 0, %s46
      %s49 = sphi 0, %s48
      %s63 = sphi 0, %s49
      %s69 = sphi 0, %s71
      %s72 = sphi 0, %s69
      %s73 = sphi 0, %s72
      %s89 = sphi 0, %s73
    $region4: #{tpu_custom_call.1} parent=1 // loop_header_branch
      %15 = sbr.rel (%p13) target = $region8
    $region5: #{tpu_custom_call.1} parent=1 // loop_body
      %s17 = ssub.s32 %s12, 1
      %s18 = ssub.s32 %s12, 2
      %s19 = sadd.s32 %s12, 1
      %s20 = ssub.s32 %s12, %s19
      %p21 = scmp.eq.s32.totalorder %s20, 0
      %s23 = sadd.s32 %s22, 1
      %s24 = scalar_select %p21, %s22, %s23
      %p27 = pneg %p21
      %p28 = scmp.eq.s32.totalorder %s12, 1
      %p29 = por %p27, %p28
      %p30 = scmp.ne.s32.totalorder %s22, %s25
      %p31 = scmp.eq.s32.totalorder %s12, 0
      %p32 = por %p30, %p31
      %p33 = scmp.ne.s32.totalorder %s22, %s25
      %p34 = scmp.eq.s32.totalorder %s17, 1
      %p35 = por %p33, %p34
      %p36 = scmp.ne.s32.totalorder %s25, %s26
      %p37 = scmp.eq.s32.totalorder %s17, 0
      %p38 = por %p36, %p37
      %p39 = scmp.ne.s32.totalorder %s25, %s26
      %p40 = scmp.eq.s32.totalorder %s18, 1
      %p41 = por %p39, %p40
      %p43 = scmp.ne.s32.totalorder %s26, %s42
      %p44 = scmp.eq.s32.totalorder %s18, 0
      %p45 = por %p43, %p44
      %s47 = sadd.s32 %s46, 1
      %p50 = scmp.eq.s32.totalorder %s12, 1
      %p51 = scmp.ne.s32.totalorder %s46, %s48
      %p52 = scmp.eq.s32.totalorder %s12, 0
      %p53 = por %p51, %p52
      %p54 = scmp.ne.s32.totalorder %s46, %s48
      %p55 = scmp.eq.s32.totalorder %s17, 1
      %p56 = por %p54, %p55
      %p57 = scmp.ne.s32.totalorder %s48, %s49
      %p58 = scmp.eq.s32.totalorder %s17, 0
      %p59 = por %p57, %p58
      %p60 = scmp.ne.s32.totalorder %s48, %s49
      %p61 = scmp.eq.s32.totalorder %s18, 1
      %p62 = por %p60, %p61
      %p64 = scmp.ne.s32.totalorder %s49, %s63
      %p65 = scmp.eq.s32.totalorder %s18, 0
      %p66 = por %p64, %p65
      %s67 = ssub.s32 %s12, %s19
      %p68 = scmp.eq.s32.totalorder %s67, 0
      %s70 = sadd.s32 %s69, 1
      %s71 = scalar_select %p68, %s69, %s70
      %p74 = pneg %p68
      %p75 = scmp.eq.s32.totalorder %s12, 1
      %p76 = por %p74, %p75
      %p77 = scmp.ne.s32.totalorder %s69, %s72
      %p78 = scmp.eq.s32.totalorder %s12, 0
      %p79 = por %p77, %p78
      %p80 = scmp.ne.s32.totalorder %s69, %s72
      %p81 = scmp.eq.s32.totalorder %s17, 1
      %p82 = por %p80, %p81
      %p83 = scmp.ne.s32.totalorder %s72, %s73
      %p84 = scmp.eq.s32.totalorder %s17, 0
      %p85 = por %p83, %p84
      %p86 = scmp.ne.s32.totalorder %s72, %s73
      %p87 = scmp.eq.s32.totalorder %s18, 1
      %p88 = por %p86, %p87
      %p90 = scmp.ne.s32.totalorder %s73, %s89
      %p91 = scmp.eq.s32.totalorder %s18, 0
      %p92 = por %p90, %p91
      %p93 = scmp.le.s32.totalorder 1, %s12
      %p94 = scmp.lt.s32.totalorder %s12, 3
      %p95 = pnand %p93, %p94
      %p96 = pneg %p95
      // Predicated region
      $region9: #{tpu_custom_call.1} parent=5 // pred_check
        _
      $region10: #{tpu_custom_call.1} parent=5 // pred_check_branch
        %98 = sbr.rel (%p95) target = $region12
      $region11: #{tpu_custom_call.1} parent=5 // pred_region
        %s99 = ssub.s32 %s12, 1
        // Predicated region
        $region13: #{tpu_custom_call.1} parent=11 // pred_check
          %p100 = pneg %p59
        $region14: #{tpu_custom_call.1} parent=11 // pred_check_branch
          %102 = sbr.rel (%p100) target = $region16
        $region15: #{tpu_custom_call.1} parent=11 // pred_region
          %s104 = ssub.s32 2048, 2048
          %105 = vsyncadd [#allocation3], %s104
          %s106 = sshll.u32 [#allocation2], 4
          %s107 = int_to_ptr.vmem [resolvable:$true] %s106
          %112 = dma.hbm_to_vmem [thread:$0]  %s1, 2048, %s107, [#allocation3], 64, 64, 4
        $region16: #{tpu_custom_call.1} parent=11 // pred_fallthru
          _
      $region12: #{tpu_custom_call.1} parent=5 // pred_fallthru
        _
      %p113 = scmp.lt.s32.totalorder %s12, 2
      // Predicated region
      $region17: #{tpu_custom_call.1} parent=5 // pred_check
        %p114 = pneg %p113
      $region18: #{tpu_custom_call.1} parent=5 // pred_check_branch
        %116 = sbr.rel (%p114) target = $region20
      $region19: #{tpu_custom_call.1} parent=5 // pred_region
        // Predicated region
        $region21: #{tpu_custom_call.1} parent=19 // pred_check
          %p117 = pneg %p32
        $region22: #{tpu_custom_call.1} parent=19 // pred_check_branch
          %119 = sbr.rel (%p117) target = $region24
        $region23: #{tpu_custom_call.1} parent=19 // pred_region
          %s120 = smul.u32 2, %s12
          %p121 = scmp.lt.s32.totalorder %s120, 3
          %s122 = scalar_select %p121, %s120, 3
          %s123 = smul.addr %s122, 8
          %s124 = scalar_lea.vmem %s0, %s123
          %s125 = smul.u32 2, %s12
        $region24: #{tpu_custom_call.1} parent=19 // pred_fallthru
          _
      $region20: #{tpu_custom_call.1} parent=5 // pred_fallthru
        _
      %p126 = scmp.le.s32.totalorder 1, %s12
      %p127 = scmp.lt.s32.totalorder %s12, 3
      %p128 = pnand %p126, %p127
      %p129 = pneg %p128
      // Predicated region
      $region25: #{tpu_custom_call.1} parent=5 // pred_check
        _
      $region26: #{tpu_custom_call.1} parent=5 // pred_check_branch
        %131 = sbr.rel (%p128) target = $region28
      $region27: #{tpu_custom_call.1} parent=5 // pred_region
        %s132 = ssub.s32 %s12, 1
        // Predicated region
        $region29: #{tpu_custom_call.1} parent=27 // pred_check
          %p133 = pneg %p59
        $region30: #{tpu_custom_call.1} parent=27 // pred_check_branch
          %135 = sbr.rel (%p133) target = $region32
        $region31: #{tpu_custom_call.1} parent=27 // pred_region
          %136 = dma.done [#allocation3], 2048
        $region32: #{tpu_custom_call.1} parent=27 // pred_fallthru
          _
        %s137 = smul.u32 2, %s17
        %p138 = scmp.lt.s32.totalorder %s137, 3
        %s139 = scalar_select %p138, %s137, 3
        %s140 = smul.addr %s139, 8
        %s141 = scalar_lea.vmem %s0, %s140
        %p142 = pneg %p38
        %p143 = pneg %p35
        %p144 = pneg %p59
        %p145 = pneg %p56
        %p146 = pneg %p85
        %p147 = pneg %p82
        %s148 = sand.u32 %s72, 1
        %s149 = scalar_lea.sflag [#allocation4], %s148
        %s150 = sand.u32 %s72, 1
        %s151 = smul.addr %s150, 16
        %s152 = scalar_lea.vmem [#allocation5], %s151
        %s153 = smul.u32 2, %s17
        %p154 = scmp.lt.s32.totalorder %s153, 3
        %s155 = scalar_select %p154, %s153, 3
        %s156 = smul.addr %s155, 8
        %s157 = scalar_lea.vmem %s0, %s156
        %s158 = smul.u32 2, %s17
        %s159 = smul.u32 2, %s17
        %v161 = vld [vmem:[%s157] sm:$0xff]
        %v162 = vld [vmem:[%s157 + $0x8] sm:$0xff]
        %v163 = vlaneseq
        %v164 = vand.u32 %v163, 127
        %v165 = vadd.s32 %v164, 128
        %166 = vset.pattern.permute.xlu0 0
        %167 = vperm.xlu0 %166, %v161
        %v168 = vpop.permute.xlu0 %167
        %169 = vset.pattern.permute.xlu0 0
        %170 = vperm.xlu0 %169, %v162
        %v171 = vpop.permute.xlu0 %170
        %vm172 = vcmp.eq.s32.totalorder %v168, %v164
        %vm173 = vcmp.eq.s32.totalorder %v168, %v165
        %vm174 = vcmp.eq.s32.totalorder %v171, %v164
        %vm175 = vcmp.eq.s32.totalorder %v171, %v165
        %v176 = vsel %vm172, 1, 0
        %v177 = vsel %vm173, 1, 0
        %v178 = vsel %vm174, 1, 0
        %v179 = vsel %vm175, 1, 0
        %v180 = vcvt.s32.f32 %v176
        %v181 = vcvt.s32.f32 %v177
        %v182 = vcvt.s32.f32 %v178
        %v183 = vcvt.s32.f32 %v179
        %v184 = vpack.c.bf16 %v182, %v180
        %v185 = vpack.c.bf16 %v183, %v181
        %v186 = vld [vmem:[#allocation2] sm:$0xf]
        %v187 = vld [vmem:[#allocation2 + $0x4] sm:$0xf]
        %v188 = vld [vmem:[#allocation2 + $0x8] sm:$0xf]
        %v189 = vld [vmem:[#allocation2 + $0xc] sm:$0xf]
        %v190 = vld [vmem:[#allocation2 + $0x10] sm:$0xf]
        %v191 = vld [vmem:[#allocation2 + $0x14] sm:$0xf]
        %v192 = vld [vmem:[#allocation2 + $0x18] sm:$0xf]
        %v193 = vld [vmem:[#allocation2 + $0x1c] sm:$0xf]
        %v194 = vld [vmem:[#allocation2 + $0x20] sm:$0xf]
        %v195 = vld [vmem:[#allocation2 + $0x24] sm:$0xf]
        %v196 = vld [vmem:[#allocation2 + $0x28] sm:$0xf]
        %v197 = vld [vmem:[#allocation2 + $0x2c] sm:$0xf]
        %v198 = vld [vmem:[#allocation2 + $0x30] sm:$0xf]
        %v199 = vld [vmem:[#allocation2 + $0x34] sm:$0xf]
        %v200 = vld [vmem:[#allocation2 + $0x38] sm:$0xf]
        %v201 = vld [vmem:[#allocation2 + $0x3c] sm:$0xf]
        %v202 = vld [vmem:[#allocation2 + $0x40] sm:$0xf]
        %v203 = vld [vmem:[#allocation2 + $0x44] sm:$0xf]
        %v204 = vld [vmem:[#allocation2 + $0x48] sm:$0xf]
        %v205 = vld [vmem:[#allocation2 + $0x4c] sm:$0xf]
        %v206 = vld [vmem:[#allocation2 + $0x50] sm:$0xf]
        %v207 = vld [vmem:[#allocation2 + $0x54] sm:$0xf]
        %v208 = vld [vmem:[#allocation2 + $0x58] sm:$0xf]
        %v209 = vld [vmem:[#allocation2 + $0x5c] sm:$0xf]
        %v210 = vld [vmem:[#allocation2 + $0x60] sm:$0xf]
        %v211 = vld [vmem:[#allocation2 + $0x64] sm:$0xf]
        %v212 = vld [vmem:[#allocation2 + $0x68] sm:$0xf]
        %v213 = vld [vmem:[#allocation2 + $0x6c] sm:$0xf]
        %v214 = vld [vmem:[#allocation2 + $0x70] sm:$0xf]
        %v215 = vld [vmem:[#allocation2 + $0x74] sm:$0xf]
        %v216 = vld [vmem:[#allocation2 + $0x78] sm:$0xf]
        %v217 = vld [vmem:[#allocation2 + $0x7c] sm:$0xf]
        %v250 = vunpack.c.l.b16 %v186
        %v251 = vunpack.c.l.b16 %v187
        %v252 = vunpack.c.l.b16 %v188
        %v253 = vunpack.c.l.b16 %v189
        %v254 = vunpack.c.l.b16 %v190
        %v255 = vunpack.c.l.b16 %v191
        %v256 = vunpack.c.l.b16 %v192
        %v257 = vunpack.c.l.b16 %v193
        %v258 = vunpack.c.l.b16 %v194
        %v259 = vunpack.c.l.b16 %v195
        %v260 = vunpack.c.l.b16 %v196
        %v261 = vunpack.c.l.b16 %v197
        %v262 = vunpack.c.l.b16 %v198
        %v263 = vunpack.c.l.b16 %v199
        %v264 = vunpack.c.l.b16 %v200
        %v265 = vunpack.c.l.b16 %v201
        %v266 = vunpack.c.l.b16 %v202
        %v267 = vunpack.c.l.b16 %v203
        %v268 = vunpack.c.l.b16 %v204
        %v269 = vunpack.c.l.b16 %v205
        %v270 = vunpack.c.l.b16 %v206
        %v271 = vunpack.c.l.b16 %v207
        %v272 = vunpack.c.l.b16 %v208
        %v273 = vunpack.c.l.b16 %v209
        %v274 = vunpack.c.l.b16 %v210
        %v275 = vunpack.c.l.b16 %v211
        %v276 = vunpack.c.l.b16 %v212
        %v277 = vunpack.c.l.b16 %v213
        %v278 = vunpack.c.l.b16 %v214
        %v279 = vunpack.c.l.b16 %v215
        %v280 = vunpack.c.l.b16 %v216
        %v281 = vunpack.c.l.b16 %v217
        %v282 = vpack.c.b16 %v251, %v250
        %v283 = vpack.c.b16 %v253, %v252
        %v284 = vpack.c.b16 %v255, %v254
        %v285 = vpack.c.b16 %v257, %v256
        %v286 = vpack.c.b16 %v259, %v258
        %v287 = vpack.c.b16 %v261, %v260
        %v288 = vpack.c.b16 %v263, %v262
        %v289 = vpack.c.b16 %v265, %v264
        %v290 = vpack.c.b16 %v267, %v266
        %v291 = vpack.c.b16 %v269, %v268
        %v292 = vpack.c.b16 %v271, %v270
        %v293 = vpack.c.b16 %v273, %v272
        %v294 = vpack.c.b16 %v275, %v274
        %v295 = vpack.c.b16 %v277, %v276
        %v296 = vpack.c.b16 %v279, %v278
        %v297 = vpack.c.b16 %v281, %v280
        %314 = vmatprep.subr.bf16.mxu0 0
        %315 = vmatpush1.bf16.msra.mxu0 %v282
        %316 = vmatprep.subr.bf16.mxu0 0
        %317 = vmatpush1.bf16.msra.mxu0 %v283
        %318 = vmatprep.subr.bf16.mxu0 0
        %319 = vmatpush1.bf16.msra.mxu0 %v284
        %320 = vmatprep.subr.bf16.mxu0 0
        %321 = vmatpush1.bf16.msra.mxu0 %v285
        %322 = vmatprep.subr.bf16.mxu0 0
        %323 = vmatpush1.bf16.msra.mxu0 %v286
        %324 = vmatprep.subr.bf16.mxu0 0
        %325 = vmatpush1.bf16.msra.mxu0 %v287
        %326 = vmatprep.subr.bf16.mxu0 0
        %327 = vmatpush1.bf16.msra.mxu0 %v288
        %328 = vmatprep.subr.bf16.mxu0 0
        %329 = vmatpush1.bf16.msra.mxu0 %v289
        %330 = vmatprep.subr.bf16.mxu0 0
        %331 = vmatpush1.bf16.msra.mxu0 %v290
        %332 = vmatprep.subr.bf16.mxu0 0
        %333 = vmatpush1.bf16.msra.mxu0 %v291
        %334 = vmatprep.subr.bf16.mxu0 0
        %335 = vmatpush1.bf16.msra.mxu0 %v292
        %336 = vmatprep.subr.bf16.mxu0 0
        %337 = vmatpush1.bf16.msra.mxu0 %v293
        %338 = vmatprep.subr.bf16.mxu0 0
        %339 = vmatpush1.bf16.msra.mxu0 %v294
        %340 = vmatprep.subr.bf16.mxu0 0
        %341 = vmatpush1.bf16.msra.mxu0 %v295
        %342 = vmatprep.subr.bf16.mxu0 0
        %343 = vmatpush1.bf16.msra.mxu0 %v296
        %344 = vmatprep.subr.bf16.mxu0 0
        %345 = vmatpush1.bf16.msra.mxu0 %v297
        %346 = vmatprep.mubr.bf16.mxu0 %v185
        %347 = vmatmul.mubr.bf16.gmra.mrb[0].mxu0 %v184
        %v348 = vpop.f32.mrb[0].mxu0
        %v349 = vadd.f32 0.0, %v348
        %v350 = vpop.f32.mrb[0].mxu0
        %v351 = vpop.f32.mrb[0].mxu0
        %v352 = vadd.f32 0.0, %v351
        %v353 = vpop.f32.mrb[0].mxu0
        %354 = vdwg.mxu0
        %355 = vst [vmem:[%s152] sm:$0xff] %v349
        %356 = vst [vmem:[%s152 + $0x8] sm:$0xff] %v352
        %s357 = sand.u32 %s72, 1
        %s358 = scalar_lea.sflag [#allocation4], %s357
        %s359 = sand.u32 %s72, 1
        %s360 = smul.addr %s359, 16
        %s361 = scalar_lea.vmem [#allocation5], %s360
        // Predicated region
        $region33: #{tpu_custom_call.1} parent=27 // pred_check
          %p362 = pneg %p82
        $region34: #{tpu_custom_call.1} parent=27 // pred_check_branch
          %364 = sbr.rel (%p362) target = $region36
        $region35: #{tpu_custom_call.1} parent=27 // pred_region
          %s365 = smul.u32 2, %s17
          %s367 = ssub.s32 256, 256
          %368 = vsyncadd %s358, %s367
          %s369 = smul.addr %s365, 128
          %s370 = scalar_lea.hbm %s2, %s369
          %s371 = sshll.u32 %s361, 4
          %s372 = int_to_ptr.vmem [resolvable:$true] %s371
          %377 = dma.vmem_to_hbm [thread:$0]  %s372, 256, %s370, %s358, 128, 128, 8
        $region36: #{tpu_custom_call.1} parent=27 // pred_fallthru
          _
      $region28: #{tpu_custom_call.1} parent=5 // pred_fallthru
        _
      %p378 = scmp.le.s32.totalorder 2, %s12
      // Predicated region
      $region37: #{tpu_custom_call.1} parent=5 // pred_check
        %p379 = pneg %p378
      $region38: #{tpu_custom_call.1} parent=5 // pred_check_branch
        %381 = sbr.rel (%p379) target = $region40
      $region39: #{tpu_custom_call.1} parent=5 // pred_region
        %s382 = ssub.s32 %s12, 2
        // Predicated region
        $region41: #{tpu_custom_call.1} parent=39 // pred_check
          %p383 = pneg %p88
        $region42: #{tpu_custom_call.1} parent=39 // pred_check_branch
          %385 = sbr.rel (%p383) target = $region44
        $region43: #{tpu_custom_call.1} parent=39 // pred_region
          %s386 = sand.u32 %s73, 1
          %s387 = scalar_lea.sflag [#allocation4], %s386
          %s388 = sand.u32 %s73, 1
          %s389 = smul.addr %s388, 16
          %s390 = scalar_lea.vmem [#allocation5], %s389
          %391 = dma.done %s387, 256
        $region44: #{tpu_custom_call.1} parent=39 // pred_fallthru
          _
      $region40: #{tpu_custom_call.1} parent=5 // pred_fallthru
        _
    $region6: #{tpu_custom_call.1} parent=1 // loop_footer
      %s16 = sadd.s32 1, %s12
    $region7: #{tpu_custom_call.1} parent=1 // loop_footer_branch
      %11 = sbr.rel target = $region3
    $region8: #{tpu_custom_call.1} parent=1 // loop_exit
      _
    %392 = vsyncpa [#allocation3], 1
    %s393 = scalar_lea.sflag [#allocation3], 1
    %394 = vsyncpa %s393, 1
    %395 = vsyncpa [#allocation4], 1
    %s396 = scalar_lea.sflag [#allocation4], 1
    %397 = vsyncpa %s396, 1

</llo_original>
